<compile_context>
chip_gen: v7x
topology: tpu7x:2x2x1
jax: 0.10.0
libtpu: 0.0.40
codegen_flags: <defaults>
</compile_context>

<pallas_src>
import math
import functools

import jax
import jax.numpy as jnp
from jax.experimental import pallas as pl
from jax.experimental.pallas import tpu as pltpu


def _round_up(x, m):
    return ((x + m - 1) // m) * m


def _embedding_kernel(ids_ref, emb_hbm, o_ref, buf, sems, *, tm, scale, vocab):
    # ids_ref : (m_pad,) int32        SMEM (scalar prefetch)
    # emb_hbm : (vocab, d_model)      HBM  (raw ref, manual DMA gather)
    # o_ref   : (tm, d_model)         VMEM (output tile t)
    # buf     : (2, tm, d_model)      VMEM (double-buffered gather landing)
    # sems    : (2,)                  DMA semaphores (one per slot)
    t = pl.program_id(0)
    nt = pl.num_programs(0)
    slot = t % 2
    nslot = (t + 1) % 2

    def issue(tile, s):
        base = tile * tm

        @pl.loop(0, tm)
        def _(r):
            tok = ids_ref[base + r]
            # Clamp so a bad id can never drive the DMA out of bounds
            # (which would hard-fault the chip, not raise an error).
            tok = jnp.minimum(jnp.maximum(tok, 0), vocab - 1)
            pltpu.make_async_copy(
                emb_hbm.at[pl.ds(tok, 1), :],
                buf.at[s, pl.ds(r, 1), :],
                sems.at[s],
            ).start()

    # Prologue: prime slot 0 with tile 0's rows.
    @pl.when(t == 0)
    def _():
        issue(0, 0)

    # Prefetch tile t+1 into the other slot BEFORE waiting on tile t,
    # so its DMAs run concurrently with this step's wait/compute/store.
    @pl.when(t + 1 < nt)
    def _():
        issue(t + 1, nslot)

    # Drain tile t's gathers.  Every wait descriptor has the same (1, d_model)
    # shape as the issuing copies, so tm waits exactly balance tm completions
    # on the shared per-slot semaphore.
    @pl.loop(0, tm)
    def _(r):
        pltpu.make_async_copy(
            emb_hbm.at[pl.ds(0, 1), :],
            buf.at[slot, pl.ds(r, 1), :],
            sems.at[slot],
        ).wait()

    # Scale on the VPU (free filler under the DMA-bound regime) and store the
    # lane-dense (tm, d_model) output tile.
    o_ref[...] = (buf[slot].astype(jnp.float32) * scale).astype(o_ref.dtype)


def input_embeddings(ids, emb_table, *, tm=256,
                     vmem_buffer_budget_bytes=12 * 1024 * 1024):
    """ids: int array [...], emb_table: [vocab, d_model] -> [..., d_model]."""
    vocab, d_model = emb_table.shape
    scale = float(math.sqrt(d_model))

    orig_shape = ids.shape
    ids_flat = ids.reshape(-1).astype(jnp.int32)
    m = ids_flat.shape[0]

    # Row tile: multiple of 8 sublanes, capped by (a) the token count and
    # (b) a VMEM budget covering the 4 resident (tm, d_model) buffers
    # (2 gather slots + 2 pipelined output buffers) — keeps the kernel inside
    # v7x's smaller VMEM as well as the v5e/v6e scoped defaults.
    itemsize = jnp.dtype(emb_table.dtype).itemsize
    max_tm_vmem = max(
        8, (vmem_buffer_budget_bytes // (4 * d_model * itemsize) // 8) * 8)
    tm = max(8, (int(tm) // 8) * 8)
    tm = min(tm, max_tm_vmem, _round_up(m, 8))

    m_pad = _round_up(m, tm)
    if m_pad != m:
        ids_flat = jnp.pad(ids_flat, (0, m_pad - m))  # pad tail with valid id 0
    num_tiles = m_pad // tm

    kernel = functools.partial(_embedding_kernel, tm=tm, scale=scale, vocab=vocab)

    out = pl.pallas_call(
        kernel,
        out_shape=jax.ShapeDtypeStruct((m_pad, d_model), emb_table.dtype),
        grid_spec=pltpu.PrefetchScalarGridSpec(
            num_scalar_prefetch=1,                         # ids -> SMEM
            grid=(num_tiles,),
            in_specs=[pl.BlockSpec(memory_space=pl.ANY)],  # table stays in HBM
            out_specs=pl.BlockSpec((tm, d_model), lambda t, ids: (t, 0)),
            scratch_shapes=[
                pltpu.VMEM((2, tm, d_model), emb_table.dtype),  # gather slots
                pltpu.SemaphoreType.DMA((2,)),                  # one sem / slot
            ],
        ),
        compiler_params=pltpu.CompilerParams(
            # DMA state is carried from step t to t+1 (slot prefetch), so the
            # grid axis must stay sequential — "parallel" would split the carry.
            dimension_semantics=("arbitrary",),
            vmem_limit_bytes=32 * 1024 * 1024,
        ),
    )(ids_flat, emb_table)

    out = out[:m]
    return out.reshape(*orig_shape, d_model)


if __name__ == "__main__":
    key = jax.random.PRNGKey(0)
    # Small but lane-dense shapes: d_model multiple of 128 -> unmasked stores.
    batch, seq, d_model, vocab_size = 2, 8, 256, 512

    k_ids, k_emb = jax.random.split(key)
    ids = jax.random.randint(k_ids, (batch, seq), 0, vocab_size, dtype=jnp.int32)
    # nn.Embedding default init ~ N(0, 1)
    emb = jax.random.normal(k_emb, (vocab_size, d_model), jnp.float32)

    # tm=8 -> 2 grid steps, so the demo exercises the prologue, the cross-step
    # prefetch and the drain step of the double-buffered gather.
    out = input_embeddings(ids, emb, tm=8)
    out = jax.block_until_ready(out)

    # Pure-JAX reference
    ref = emb[ids] * math.sqrt(d_model)
    assert out.shape == (batch, seq, d_model)
    assert jnp.allclose(out, ref, atol=1e-5, rtol=1e-5)

    print("KERNEL_OK")
</pallas_src>

<mosaic_0001>
module attributes {stable_mosaic.version = 11 : i64} {
  func.func @_embedding_kernel(%arg0: i32, %arg1: memref<16xi32, #tpu.memory_space<smem>>, %arg2: memref<512x256xf32, #tpu.memory_space<any>>, %arg3: memref<8x256xf32, #tpu.memory_space<vmem>>, %arg4: memref<2x8x256xf32, #tpu.memory_space<vmem>>, %arg5: memref<2x!tpu.dma_semaphore, #tpu.memory_space<semaphore_mem>>) attributes {dimension_semantics = [#tpu.dimension_semantics<arbitrary>], iteration_bounds = array<i64: 2>, scalar_prefetch = 1 : i64, scratch_operands = 2 : i64, tpu.core_type = #tpu.core_type<tc>, window_params = [{}, {transform_indices = @transform_1, window_bounds = array<i64: 8, 256>}]} {
    %c2_i32 = arith.constant 2 : i32
    %c0_i32 = arith.constant 0 : i32
    %0 = arith.cmpi eq, %c2_i32, %c0_i32 : i32
    %c1_i32 = arith.constant 1 : i32
    %1 = arith.select %0, %c1_i32, %c2_i32 : i32
    %2 = arith.remsi %arg0, %1 : i32
    %c0_i32_0 = arith.constant 0 : i32
    %3 = arith.cmpi ne, %2, %c0_i32_0 : i32
    %c0_i32_1 = arith.constant 0 : i32
    %4 = arith.cmpi slt, %2, %c0_i32_1 : i32
    %c0_i32_2 = arith.constant 0 : i32
    %5 = arith.cmpi slt, %1, %c0_i32_2 : i32
    %6 = arith.xori %4, %5 : i1
    %7 = arith.andi %6, %3 : i1
    %8 = arith.addi %2, %1 : i32
    %9 = arith.select %7, %8, %2 : i32
    %c1_i32_3 = arith.constant 1 : i32
    %10 = arith.addi %arg0, %c1_i32_3 : i32
    %c2_i32_4 = arith.constant 2 : i32
    %c0_i32_5 = arith.constant 0 : i32
    %11 = arith.cmpi eq, %c2_i32_4, %c0_i32_5 : i32
    %c1_i32_6 = arith.constant 1 : i32
    %12 = arith.select %11, %c1_i32_6, %c2_i32_4 : i32
    %13 = arith.remsi %10, %12 : i32
    %c0_i32_7 = arith.constant 0 : i32
    %14 = arith.cmpi ne, %13, %c0_i32_7 : i32
    %c0_i32_8 = arith.constant 0 : i32
    %15 = arith.cmpi slt, %13, %c0_i32_8 : i32
    %c0_i32_9 = arith.constant 0 : i32
    %16 = arith.cmpi slt, %12, %c0_i32_9 : i32
    %17 = arith.xori %15, %16 : i1
    %18 = arith.andi %17, %14 : i1
    %19 = arith.addi %13, %12 : i32
    %20 = arith.select %18, %19, %13 : i32
    %c0_i32_10 = arith.constant 0 : i32
    %21 = arith.cmpi eq, %arg0, %c0_i32_10 : i32
    %22 = arith.extui %21 : i1 to i32
    %c0_i32_11 = arith.constant 0 : i32
    %23 = arith.cmpi ne, %22, %c0_i32_11 : i32
    scf.if %23 {
      %c0_i32_21 = arith.constant 0 : i32
      %c8_i32_22 = arith.constant 8 : i32
      %35 = arith.addi %c0_i32_21, %c8_i32_22 : i32
      %c1_i32_23 = arith.constant 1 : i32
      scf.for %arg6 = %c0_i32_21 to %35 step %c1_i32_23  : i32 {
        %c1_i32_25 = arith.constant 1 : i32
        %36 = arith.muli %arg6, %c1_i32_25 : i32
        %c0_i32_26 = arith.constant 0 : i32
        %37 = arith.addi %c0_i32_26, %36 : i32
        %c0_i32_27 = arith.constant 0 : i32
        %38 = arith.addi %c0_i32_27, %37 : i32
        %39 = arith.index_cast %38 : i32 to index
        %40 = memref.load %arg1[%39] : memref<16xi32, #tpu.memory_space<smem>>
        %c0_i32_28 = arith.constant 0 : i32
        %41 = arith.maxsi %40, %c0_i32_28 : i32
        %c511_i32 = arith.constant 511 : i32
        %42 = arith.minsi %41, %c511_i32 : i32
        %c0_i32_29 = arith.constant 0 : i32
        %c0_i32_30 = arith.constant 0 : i32
        %c0_i32_31 = arith.constant 0 : i32
        %43 = tpu.memref_slice %arg2[%42, %c0_i32_31] : memref<512x256xf32, #tpu.memory_space<any>> -> memref<1x256xf32, #tpu.memory_space<any>>
        %c0_i32_32 = arith.constant 0 : i32
        %44 = tpu.memref_slice %arg4[%c0_i32_29, %37, %c0_i32_32] : memref<2x8x256xf32, #tpu.memory_space<vmem>> -> memref<1x1x256xf32, #tpu.memory_space<vmem>>
        %45 = tpu.memref_squeeze %44 : memref<1x1x256xf32, #tpu.memory_space<vmem>> -> memref<1x256xf32, #tpu.memory_space<vmem>>
        %46 = tpu.memref_slice %arg5[%c0_i32_30] : memref<2x!tpu.dma_semaphore, #tpu.memory_space<semaphore_mem>> -> memref<1x!tpu.dma_semaphore, #tpu.memory_space<semaphore_mem>>
        %47 = tpu.memref_squeeze %46 : memref<1x!tpu.dma_semaphore, #tpu.memory_space<semaphore_mem>> -> memref<!tpu.dma_semaphore, #tpu.memory_space<semaphore_mem>>
        tpu.enqueue_dma source(%43 : memref<1x256xf32, #tpu.memory_space<any>>) target(%45 : memref<1x256xf32, #tpu.memory_space<vmem>>) target_semaphore(%47 : memref<!tpu.dma_semaphore, #tpu.memory_space<semaphore_mem>>)
      }
      %c8_i32_24 = arith.constant 8 : i32
    } else {
    }
    %c1_i32_12 = arith.constant 1 : i32
    %24 = arith.addi %arg0, %c1_i32_12 : i32
    %c2_i32_13 = arith.constant 2 : i32
    %25 = arith.cmpi slt, %24, %c2_i32_13 : i32
    %26 = arith.extui %25 : i1 to i32
    %c0_i32_14 = arith.constant 0 : i32
    %27 = arith.cmpi ne, %26, %c0_i32_14 : i32
    scf.if %27 {
      %c1_i32_21 = arith.constant 1 : i32
      %35 = arith.addi %arg0, %c1_i32_21 : i32
      %c8_i32_22 = arith.constant 8 : i32
      %36 = arith.muli %35, %c8_i32_22 : i32
      %c0_i32_23 = arith.constant 0 : i32
      %c8_i32_24 = arith.constant 8 : i32
      %37 = arith.addi %c0_i32_23, %c8_i32_24 : i32
      %c1_i32_25 = arith.constant 1 : i32
      scf.for %arg6 = %c0_i32_23 to %37 step %c1_i32_25  : i32 {
        %c1_i32_27 = arith.constant 1 : i32
        %38 = arith.muli %arg6, %c1_i32_27 : i32
        %c0_i32_28 = arith.constant 0 : i32
        %39 = arith.addi %c0_i32_28, %38 : i32
        %40 = arith.addi %36, %39 : i32
        %41 = arith.index_cast %40 : i32 to index
        %42 = memref.load %arg1[%41] : memref<16xi32, #tpu.memory_space<smem>>
        %c0_i32_29 = arith.constant 0 : i32
        %43 = arith.maxsi %42, %c0_i32_29 : i32
        %c511_i32 = arith.constant 511 : i32
        %44 = arith.minsi %43, %c511_i32 : i32
        %c0_i32_30 = arith.constant 0 : i32
        %45 = tpu.memref_slice %arg2[%44, %c0_i32_30] : memref<512x256xf32, #tpu.memory_space<any>> -> memref<1x256xf32, #tpu.memory_space<any>>
        %c0_i32_31 = arith.constant 0 : i32
        %46 = tpu.memref_slice %arg4[%20, %39, %c0_i32_31] : memref<2x8x256xf32, #tpu.memory_space<vmem>> -> memref<1x1x256xf32, #tpu.memory_space<vmem>>
        %47 = tpu.memref_squeeze %46 : memref<1x1x256xf32, #tpu.memory_space<vmem>> -> memref<1x256xf32, #tpu.memory_space<vmem>>
        %48 = tpu.memref_slice %arg5[%20] : memref<2x!tpu.dma_semaphore, #tpu.memory_space<semaphore_mem>> -> memref<1x!tpu.dma_semaphore, #tpu.memory_space<semaphore_mem>>
        %49 = tpu.memref_squeeze %48 : memref<1x!tpu.dma_semaphore, #tpu.memory_space<semaphore_mem>> -> memref<!tpu.dma_semaphore, #tpu.memory_space<semaphore_mem>>
        tpu.enqueue_dma source(%45 : memref<1x256xf32, #tpu.memory_space<any>>) target(%47 : memref<1x256xf32, #tpu.memory_space<vmem>>) target_semaphore(%49 : memref<!tpu.dma_semaphore, #tpu.memory_space<semaphore_mem>>)
      }
      %c8_i32_26 = arith.constant 8 : i32
    } else {
    }
    %c0_i32_15 = arith.constant 0 : i32
    %c8_i32 = arith.constant 8 : i32
    %28 = arith.addi %c0_i32_15, %c8_i32 : i32
    %c1_i32_16 = arith.constant 1 : i32
    scf.for %arg6 = %c0_i32_15 to %28 step %c1_i32_16  : i32 {
      %c1_i32_21 = arith.constant 1 : i32
      %35 = arith.muli %arg6, %c1_i32_21 : i32
      %c0_i32_22 = arith.constant 0 : i32
      %36 = arith.addi %c0_i32_22, %35 : i32
      %c0_i32_23 = arith.constant 0 : i32
      %c0_i32_24 = arith.constant 0 : i32
      %37 = tpu.memref_slice %arg2[%c0_i32_23, %c0_i32_24] : memref<512x256xf32, #tpu.memory_space<any>> -> memref<1x256xf32, #tpu.memory_space<any>>
      %c0_i32_25 = arith.constant 0 : i32
      %38 = tpu.memref_slice %arg4[%9, %36, %c0_i32_25] : memref<2x8x256xf32, #tpu.memory_space<vmem>> -> memref<1x1x256xf32, #tpu.memory_space<vmem>>
      %39 = tpu.memref_squeeze %38 : memref<1x1x256xf32, #tpu.memory_space<vmem>> -> memref<1x256xf32, #tpu.memory_space<vmem>>
      %40 = tpu.memref_slice %arg5[%9] : memref<2x!tpu.dma_semaphore, #tpu.memory_space<semaphore_mem>> -> memref<1x!tpu.dma_semaphore, #tpu.memory_space<semaphore_mem>>
      %41 = tpu.memref_squeeze %40 : memref<1x!tpu.dma_semaphore, #tpu.memory_space<semaphore_mem>> -> memref<!tpu.dma_semaphore, #tpu.memory_space<semaphore_mem>>
      tpu.wait_dma2 semaphore(%41 : memref<!tpu.dma_semaphore, #tpu.memory_space<semaphore_mem>>) src(%37 : memref<1x256xf32, #tpu.memory_space<any>>) dst(%39 : memref<1x256xf32, #tpu.memory_space<vmem>>)
    }
    %c8_i32_17 = arith.constant 8 : i32
    %29 = arith.index_cast %9 : i32 to index
    %c0 = arith.constant 0 : index
    %c0_18 = arith.constant 0 : index
    %30 = vector.load %arg4[%29, %c0, %c0_18] : memref<2x8x256xf32, #tpu.memory_space<vmem>>, vector<1x8x256xf32>
    %31 = vector.shape_cast %30 : vector<1x8x256xf32> to vector<8x256xf32>
    %cst = arith.constant 1.600000e+01 : f32
    %32 = vector.broadcast %cst : f32 to vector<8x256xf32>
    %33 = arith.mulf %31, %32 : vector<8x256xf32>
    %c0_19 = arith.constant 0 : index
    %c0_20 = arith.constant 0 : index
    %34 = vector.load %arg3[%c0_19, %c0_20] : memref<8x256xf32, #tpu.memory_space<vmem>>, vector<8x256xf32>
    tpu.vector_store %arg3[%c0_19, %c0_20], %33 {strides = array<i32>} : memref<8x256xf32, #tpu.memory_space<vmem>>, vector<8x256xf32>,
    return
  }
  func.func @transform_1(%arg0: i32, %arg1: memref<16xi32, #tpu.memory_space<smem>>) -> (i32, i32) {
    %c0_i32 = arith.constant 0 : i32
    %c0_i32_0 = arith.constant 0 : i32
    return %arg0, %c0_i32 : i32, i32
  }
}

</mosaic_0001>

<llo_original>
// kernel: tpu_custom_call.1
$region0: #{tpu_custom_call.1}
  #allocation0 [shape = 'u32[]', space=smem, size = 0x4, offset = 0x4, fixed_abs, tag = 'smem constant byte address 0x4 - core index']
  #allocation1 [shape = 'u32[144,128]{1,0:T(1,128)}', space=vmem, size = 0x12000, scoped, tag = 'internal scratch']
  #allocation2 [shape = 'f32[2,8,256]{2,1,0:T(8,128)}', space=vmem, size = 0x4000, scoped, tag = 'scratch operand']
  #allocation3 [shape = 's32[2]{0}', space=sflag, size = 0x8, scoped, tag = 'scratch operand']
  #allocation4 [shape = 's32[1]{0}', space=sflag, size = 0x4, scoped, tag = 'scoped memory for tpu_custom_call.1']
  #allocation5 [shape = 'u8[512]{0}', space=smem, size = 0x200, scoped, tag = 'prefetched SMEM operand 0']
  #allocation8 [shape = 's32[]', space=sflag, size = 0x4, offset = 0, fixed_abs, tag = 'sflag constant byte address 0x0 - dummy sync flag']
  #allocation9 [shape = 's32[]', space=sflag, size = 0x4, offset = 0, fixed_abs, tag = 'sflag constant byte address 0x0 - dummy sync flag']
  %s0 = inlined_call_operand.hbm [shape: s32[16], index: 0, kind: input, shape index: {}]
  %s1 = inlined_call_operand.hbm [shape: f32[512,256], index: 1, kind: input, shape index: {}]
  %s2 = inlined_call_operand.hbm [shape: f32[16,256], index: 2, kind: output, shape index: {}]
  %s3 = sld [smem:[#allocation0]]
  $region54: #{tpu_custom_call.1} parent=0
    _
  %s5 = ssub.s32 1, %s3
  %s6 = scalar_select 0, %s5, %s3
  %8 = dma.hbm_to_smem %s0, 16, [#allocation5], [#allocation4]
  %9 = dma.done [#allocation4], 16
  %10 = sfence
  $region1: #{tpu_custom_call.1} parent=0
    #allocation6 [shape = 'u8[16384]{0}', space=vmem, size = 0x4000, scoped, tag = 'output window, operand 0']
    #allocation7 [shape = 's32[2]{0}', space=sflag, size = 0x8, scoped, tag = 'scoped memory for tpu_custom_call.1']
    %11 = vsyncpa [#allocation7], 0
    %s12 = scalar_lea.sflag [#allocation7], 1
    %13 = vsyncpa %s12, 0
    loop: start=0, step=1, limit=3
    $region2: #{tpu_custom_call.1} parent=1 // loop_pre_header
      _
    $region3: #{tpu_custom_call.1} parent=1 // loop_header
      %s15 = sphi 0, %s19
      %p16 = scmp.ge.s32.totalorder %s15, 3
      %s24 = sphi 0, %s26
      %s27 = sphi 0, %s24
      %s37 = sphi 0, %s27
    $region4: #{tpu_custom_call.1} parent=1 // loop_header_branch
      %18 = sbr.rel (%p16) target = $region8
    $region5: #{tpu_custom_call.1} parent=1 // loop_body
      %s20 = ssub.s32 %s15, 1
      %s21 = sadd.s32 %s15, 1
      %s22 = ssub.s32 %s15, %s21
      %p23 = scmp.eq.s32.totalorder %s22, 0
      %s25 = sadd.s32 %s24, 1
      %s26 = scalar_select %p23, %s24, %s25
      %p28 = pneg %p23
      %p29 = scmp.eq.s32.totalorder %s15, 1
      %p30 = por %p28, %p29
      %p31 = scmp.ne.s32.totalorder %s24, %s27
      %p32 = scmp.eq.s32.totalorder %s15, 0
      %p33 = por %p31, %p32
      %p34 = scmp.ne.s32.totalorder %s24, %s27
      %p35 = scmp.eq.s32.totalorder %s20, 1
      %p36 = por %p34, %p35
      %p38 = scmp.ne.s32.totalorder %s27, %s37
      %p39 = scmp.eq.s32.totalorder %s20, 0
      %p40 = por %p38, %p39
      %p41 = scmp.lt.s32.totalorder %s15, 2
      // Predicated region
      $region9: #{tpu_custom_call.1} parent=5 // pred_check
        %p42 = pneg %p41
      $region10: #{tpu_custom_call.1} parent=5 // pred_check_branch
        %44 = sbr.rel (%p42) target = $region12
      $region11: #{tpu_custom_call.1} parent=5 // pred_region
        %p45 = pneg %p33
        %p46 = pneg %p30
        %s47 = sand.u32 %s24, 1
        %s48 = scalar_lea.sflag [#allocation7], %s47
        %s49 = sand.u32 %s24, 1
        %s50 = smul.addr %s49, 16
        %s51 = scalar_lea.vmem [#allocation6], %s50
        %p52 = scmp.lt.s32.totalorder %s15, 0
        %s53 = ssub.s32 0, %s15
        %s54 = scalar_select %p52, %s53, %s15
        %s55 = sand.u32 %s54, 1
        %s56 = ssub.s32 0, %s55
        %s57 = scalar_select %p52, %s56, %s55
        %p58 = scmp.ne.s32.totalorder %s57, 0
        %p59 = scmp.lt.s32.totalorder %s57, 0
        %p60 = pnand %p59, %p58
        %p61 = pneg %p60
        %s62 = sadd.s32 %s57, 2
        %s63 = scalar_select %p61, %s62, %s57
        %s64 = sadd.s32 %s15, 1
        %p65 = scmp.lt.s32.totalorder %s64, 0
        %s66 = ssub.s32 0, %s64
        %s67 = scalar_select %p65, %s66, %s64
        %s68 = sand.u32 %s67, 1
        %s69 = ssub.s32 0, %s68
        %s70 = scalar_select %p65, %s69, %s68
        %p71 = scmp.ne.s32.totalorder %s70, 0
        %p72 = scmp.lt.s32.totalorder %s70, 0
        %p73 = pnand %p72, %p71
        %p74 = pneg %p73
        %s75 = sadd.s32 %s70, 2
        %s76 = scalar_select %p74, %s75, %s70
        %p77 = scmp.eq.s32.totalorder %s15, 0
        // Predicated region
        $region13: #{tpu_custom_call.1} parent=11 // pred_check
          %p78 = pneg %p77
        $region14: #{tpu_custom_call.1} parent=11 // pred_check_branch
          %80 = sbr.rel (%p78) target = $region16
        $region15: #{tpu_custom_call.1} parent=11 // pred_region
          loop: start=0, step=1, limit=8
          $region17: #{tpu_custom_call.1} parent=15 // loop_pre_header
            _
          $region18: #{tpu_custom_call.1} parent=15 // loop_header
            %s82 = sphi 0, %s86
            %p83 = scmp.ge.s32.totalorder %s82, 8
          $region19: #{tpu_custom_call.1} parent=15 // loop_header_branch
            %85 = sbr.rel (%p83) target = $region23
          $region20: #{tpu_custom_call.1} parent=15 // loop_body
            %s87 = sld [smem:[#allocation5 + %s82]]
            %p88 = scmp.gt.s32.totalorder %s87, 0
            %s89 = scalar_select %p88, %s87, 0
            %p90 = scmp.lt.s32.totalorder %s89, 511
            %s91 = scalar_select %p90, %s89, 511
            %s92 = sshrl.u32 %s91, 3
            %s93 = sand.u32 %s91, 7
            %s94 = smul.u32 %s92, 16
            %s95 = sadd.s32 %s93, %s94
            %s96 = smul.addr %s95, 16
            %s97 = scalar_lea.hbm %s1, %s96
            %s98 = sshrl.u32 %s82, 3
            %s99 = sand.u32 %s82, 7
            %s100 = smul.u32 %s98, 16
            %s101 = sadd.s32 %s99, %s100
            %s102 = scalar_lea.vmem [#allocation2], %s101
            %s104 = sshll.u32 %s102, 4
            %s105 = int_to_ptr.vmem [resolvable:$true] %s104
            %107 = dma.hbm_to_vmem [thread:$0]  %s97, 32, %s105, [#allocation3], 128, 128, 1
          $region21: #{tpu_custom_call.1} parent=15 // loop_footer
            %s86 = sadd.s32 1, %s82
          $region22: #{tpu_custom_call.1} parent=15 // loop_footer_branch
            %81 = sbr.rel target = $region18
          $region23: #{tpu_custom_call.1} parent=15 // loop_exit
            _
        $region16: #{tpu_custom_call.1} parent=11 // pred_fallthru
          _
        %p108 = scmp.lt.s32.totalorder %s64, 2
        // Predicated region
        $region24: #{tpu_custom_call.1} parent=11 // pred_check
          %p109 = pneg %p108
        $region25: #{tpu_custom_call.1} parent=11 // pred_check_branch
          %111 = sbr.rel (%p109) target = $region27
        $region26: #{tpu_custom_call.1} parent=11 // pred_region
          %s112 = smul.u32 %s64, 8
          loop: start=0, step=1, limit=8
          $region28: #{tpu_custom_call.1} parent=26 // loop_pre_header
            _
          $region29: #{tpu_custom_call.1} parent=26 // loop_header
            %s114 = sphi 0, %s118
            %p115 = scmp.ge.s32.totalorder %s114, 8
          $region30: #{tpu_custom_call.1} parent=26 // loop_header_branch
            %117 = sbr.rel (%p115) target = $region34
          $region31: #{tpu_custom_call.1} parent=26 // loop_body
            %s119 = sadd.s32 %s112, %s114
            %s120 = sld [smem:[#allocation5 + %s119]]
            %p121 = scmp.gt.s32.totalorder %s120, 0
            %s122 = scalar_select %p121, %s120, 0
            %p123 = scmp.lt.s32.totalorder %s122, 511
            %s124 = scalar_select %p123, %s122, 511
            %s125 = sshrl.u32 %s124, 3
            %s126 = sand.u32 %s124, 7
            %s127 = smul.u32 %s125, 16
            %s128 = sadd.s32 %s126, %s127
            %s129 = smul.addr %s128, 16
            %s130 = scalar_lea.hbm %s1, %s129
            %s131 = sshrl.u32 %s114, 3
            %s132 = sand.u32 %s114, 7
            %s133 = smul.u32 %s131, 16
            %s134 = sadd.s32 %s132, %s133
            %s135 = smul.u32 %s76, 16
            %s136 = sadd.s32 %s134, %s135
            %s137 = scalar_lea.vmem [#allocation2], %s136
            %s138 = scalar_lea.sflag [#allocation3], %s76
            %s140 = sshll.u32 %s137, 4
            %s141 = int_to_ptr.vmem [resolvable:$true] %s140
            %143 = dma.hbm_to_vmem [thread:$0]  %s130, 32, %s141, %s138, 128, 128, 1
          $region32: #{tpu_custom_call.1} parent=26 // loop_footer
            %s118 = sadd.s32 1, %s114
          $region33: #{tpu_custom_call.1} parent=26 // loop_footer_branch
            %113 = sbr.rel target = $region29
          $region34: #{tpu_custom_call.1} parent=26 // loop_exit
            _
        $region27: #{tpu_custom_call.1} parent=11 // pred_fallthru
          _
        loop: start=0, step=1, limit=8
        $region35: #{tpu_custom_call.1} parent=11 // loop_pre_header
          _
        $region36: #{tpu_custom_call.1} parent=11 // loop_header
          %s145 = sphi 0, %s149
          %p146 = scmp.ge.s32.totalorder %s145, 8
        $region37: #{tpu_custom_call.1} parent=11 // loop_header_branch
          %148 = sbr.rel (%p146) target = $region41
        $region38: #{tpu_custom_call.1} parent=11 // loop_body
          %s150 = scalar_lea.sflag [#allocation3], %s63
          %s151 = smul.u32 1, 2
          %s152 = sshll.u32 %s151, 4
          %153 = dma.done %s150, %s152
        $region39: #{tpu_custom_call.1} parent=11 // loop_footer
          %s149 = sadd.s32 1, %s145
        $region40: #{tpu_custom_call.1} parent=11 // loop_footer_branch
          %144 = sbr.rel target = $region36
        $region41: #{tpu_custom_call.1} parent=11 // loop_exit
          _
        %s154 = smul.u32 %s63, 2
        %s155 = smul.addr %s154, 8
        %s156 = scalar_lea.vmem [#allocation2], %s155
        %v157 = vld [vmem:[%s156] sm:$0xff]
        %v158 = vld [vmem:[%s156 + $0x8] sm:$0xff]
        %v159 = vmul.f32 %v157, 16.0
        %v160 = vmul.f32 %v158, 16.0
        %161 = vst [vmem:[%s51] sm:$0xff] %v159
        %162 = vst [vmem:[%s51 + $0x8] sm:$0xff] %v160
        %s163 = sand.u32 %s24, 1
        %s164 = scalar_lea.sflag [#allocation7], %s163
        %s165 = sand.u32 %s24, 1
        %s166 = smul.addr %s165, 16
        %s167 = scalar_lea.vmem [#allocation6], %s166
        // Predicated region
        $region42: #{tpu_custom_call.1} parent=11 // pred_check
          %p168 = pneg %p30
        $region43: #{tpu_custom_call.1} parent=11 // pred_check_branch
          %170 = sbr.rel (%p168) target = $region45
        $region44: #{tpu_custom_call.1} parent=11 // pred_region
          %s172 = ssub.s32 256, 256
          %173 = vsyncadd %s164, %s172
          %s174 = smul.addr %s15, 2
          %s175 = smul.addr %s174, 128
          %s176 = scalar_lea.hbm %s2, %s175
          %s178 = sshll.u32 %s167, 4
          %s179 = int_to_ptr.vmem [resolvable:$true] %s178
          %181 = dma.vmem_to_hbm [thread:$0]  %s179, 256, %s176, %s164
        $region45: #{tpu_custom_call.1} parent=11 // pred_fallthru
          _
      $region12: #{tpu_custom_call.1} parent=5 // pred_fallthru
        _
      %p182 = scmp.le.s32.totalorder 1, %s15
      // Predicated region
      $region46: #{tpu_custom_call.1} parent=5 // pred_check
        %p183 = pneg %p182
      $region47: #{tpu_custom_call.1} parent=5 // pred_check_branch
        %185 = sbr.rel (%p183) target = $region49
      $region48: #{tpu_custom_call.1} parent=5 // pred_region
        %s186 = ssub.s32 %s15, 1
        // Predicated region
        $region50: #{tpu_custom_call.1} parent=48 // pred_check
          %p187 = pneg %p36
        $region51: #{tpu_custom_call.1} parent=48 // pred_check_branch
          %189 = sbr.rel (%p187) target = $region53
        $region52: #{tpu_custom_call.1} parent=48 // pred_region
          %s190 = sand.u32 %s27, 1
          %s191 = scalar_lea.sflag [#allocation7], %s190
          %s192 = sand.u32 %s27, 1
          %s193 = smul.addr %s192, 16
          %s194 = scalar_lea.vmem [#allocation6], %s193
          %195 = dma.done %s191, 256
        $region53: #{tpu_custom_call.1} parent=48 // pred_fallthru
          _
      $region49: #{tpu_custom_call.1} parent=5 // pred_fallthru
        _
    $region6: #{tpu_custom_call.1} parent=1 // loop_footer
      %s19 = sadd.s32 1, %s15
    $region7: #{tpu_custom_call.1} parent=1 // loop_footer_branch
      %14 = sbr.rel target = $region3
    $region8: #{tpu_custom_call.1} parent=1 // loop_exit
      _
    %196 = vsyncpa [#allocation7], 1
    %s197 = scalar_lea.sflag [#allocation7], 1
    %198 = vsyncpa %s197, 1
  %199 = vsyncmov [#allocation3]
  %s200 = vpop.sfrf %199
  %p201 = scmp.eq.s32.totalorder %s200, 0
  %p202 = pneg %p201
  %204 = shalt.err (%p202)
  %s205 = scalar_lea.sflag [#allocation3], 1
  %206 = vsyncmov %s205
  %s207 = vpop.sfrf %206
  %p208 = scmp.eq.s32.totalorder %s207, 0
  %p209 = pneg %p208
  %211 = shalt.err (%p209)

</llo_original>
